<compile_context>
chip_gen: v5e
topology: v5e:2x2
jax: 0.10.0
libtpu: 0.0.40
codegen_flags: <defaults>
</compile_context>

<pallas_src>
import functools
import math

import jax
import jax.numpy as jnp
from jax.experimental import pallas as pl
from jax.experimental.pallas import tpu as pltpu


# ----------------------------------------------------------------------------
# Pallas kernel: whole residual block for one block of batch images.
# All refs are 2-D; activations are lane-dense rows (row = one image scanline,
# lanes = W*C).  No VMEM scratch needed.
# ----------------------------------------------------------------------------
def resblock_dis_kernel(x_ref, w1_ref, b1_ref, w2_ref, wsc_ref,
                        sdn_ref, sup_ref, pv_ref, bo_ref, o_ref,
                        *, WC, WNh):
    bf16 = jnp.bfloat16
    dot = lambda a, b: jnp.dot(a, b, preferred_element_type=jnp.float32)

    x = x_ref[...]                          # (Bb*H, W*Cin)  bf16
    rx = jnp.maximum(x, 0)                  # relu(x), bf16

    # -- conv1 (3x3, pad 1): banded horizontal weights, vertical taps via
    #    per-image row-shift matmuls (zero rows at image borders == zero pad).
    q0 = dot(rx, w1_ref[pl.ds(0 * WC, WC), :])          # (Bb*H, W*Nh) f32
    q1 = dot(rx, w1_ref[pl.ds(1 * WC, WC), :])
    q2 = dot(rx, w1_ref[pl.ds(2 * WC, WC), :])
    h1 = (q1
          + dot(sdn_ref[...], q0.astype(bf16))
          + dot(sup_ref[...], q2.astype(bf16)))
    h1 = jnp.maximum(h1 + b1_ref[...], 0.0).astype(bf16)  # relu(conv1 + b1)

    # -- conv2 (3x3, pad 1) with horizontal 2x pooling folded into the weight.
    p0 = dot(h1, w2_ref[pl.ds(0 * WNh, WNh), :])        # (Bb*H, Wo*No) f32
    p1 = dot(h1, w2_ref[pl.ds(1 * WNh, WNh), :])
    p2 = dot(h1, w2_ref[pl.ds(2 * WNh, WNh), :])

    # -- shortcut: 1x1 conv with horizontal pooling folded into the weight.
    sc = dot(x, wsc_ref[...])                           # (Bb*H, Wo*No) f32

    # vertical taps of conv2 + vertical 2x pooling (row-pair sums) + biases.
    pre = (p1 + sc
           + dot(sdn_ref[...], p0.astype(bf16))
           + dot(sup_ref[...], p2.astype(bf16)))
    out = dot(pv_ref[...], pre.astype(bf16)) + bo_ref[...]   # (Bb*Ho, Wo*No)

    o_ref[...] = out.astype(o_ref.dtype)


# ----------------------------------------------------------------------------
# Wrapper-side operand construction (plain JAX, done once outside the kernel).
# ----------------------------------------------------------------------------
def _build_operands(params, H, W, block_b):
    w1, b1, w2, b2, ws, bs = params        # w1,w2: HWIO; ws: (Cin,No); b*: (C,)
    f32, bf16 = jnp.float32, jnp.bfloat16
    Cin, Nh = w1.shape[2], w1.shape[3]
    No = w2.shape[3]
    Ho, Wo = H // 2, W // 2

    # banded horizontal weight for vertical tap dy:
    #   block (x_in, x_out) = w[dy, dx] iff x_in == x_out + dx - 1  (zero pad
    #   at the edges falls out of the eye(W, k=...) truncation).
    def banded(w_hwio, dy):
        m = 0.0
        for dx in range(3):
            m = m + jnp.kron(jnp.eye(W, k=-(dx - 1), dtype=f32), w_hwio[dy, dx])
        return m

    w1_cat = jnp.concatenate([banded(w1, dy) for dy in range(3)], axis=0)  # (3*W*Cin, W*Nh)

    # horizontal 2x pooling operator (0.25 = full 2x2 pool scale folded here).
    hsel = (jnp.arange(W)[:, None] // 2 == jnp.arange(Wo)[None, :]).astype(f32)
    ph = 0.25 * jnp.kron(hsel, jnp.eye(No, dtype=f32))                     # (W*No, Wo*No)
    w2_cat = jnp.concatenate([banded(w2, dy) @ ph for dy in range(3)], 0)  # (3*W*Nh, Wo*No)

    # shortcut 1x1 conv with horizontal pooling folded in.
    wsc_p = 0.25 * jnp.kron(hsel, ws)                                      # (W*Cin, Wo*No)

    # per-image row operators for a batch block of block_b images:
    #   S_down / S_up: vertical conv taps (zero rows at image borders),
    #   PV0          : 0/1 row-pair sums == vertical 2x pooling (scale in ph).
    eye_b = jnp.eye(block_b, dtype=f32)
    sdn = jnp.kron(eye_b, jnp.eye(H, k=-1, dtype=f32))                     # (Bb*H, Bb*H)
    sup = jnp.kron(eye_b, jnp.eye(H, k=+1, dtype=f32))
    pvh = (jnp.arange(H)[None, :] // 2 == jnp.arange(Ho)[:, None]).astype(f32)
    pv0 = jnp.kron(eye_b, pvh)                                             # (Bb*Ho, Bb*H)

    b1row = jnp.tile(b1.reshape(1, Nh), (1, W))                            # (1, W*Nh)
    borow = jnp.tile((b2 + bs).reshape(1, No), (1, Wo))                    # (1, Wo*No)

    return (w1_cat.astype(bf16), b1row.astype(f32), w2_cat.astype(bf16),
            wsc_p.astype(bf16), sdn.astype(bf16), sup.astype(bf16),
            pv0.astype(bf16), borow.astype(f32))


# ----------------------------------------------------------------------------
# Public wrapper: NCHW in / NCHW out, grid over batch blocks.
# ----------------------------------------------------------------------------
def resblock_dis_forward(x_nchw, params, block_b=None):
    w1, _, w2, _, _, _ = params
    N, Cin, H, W = x_nchw.shape
    assert H % 2 == 0 and W % 2 == 0, "avg_pool2d(2) needs even H and W"
    Nh, No = w1.shape[-1], w2.shape[-1]
    Ho, Wo = H // 2, W // 2

    if block_b is None:
        # Fold the whole batch into one grid step (overhead-bound otherwise).
        # On v7x with large N, pass block_b = N // 2 (a divisor of N) so the
        # "parallel" grid axis gives both TensorCores work.
        block_b = N
    assert N % block_b == 0
    assert (block_b * H) % 8 == 0
    nblk = N // block_b

    # lane-dense row layout: row = one image scanline, lanes = W*Cin.
    x = jnp.transpose(x_nchw, (0, 2, 3, 1))                       # NCHW -> NHWC
    x_rows = x.reshape(N * H, W * Cin).astype(jnp.bfloat16)

    (w1c, b1r, w2c, wscp, sdn, sup, pv0, bor) = _build_operands(params, H, W, block_b)

    WC, WNh = W * Cin, W * Nh
    kernel = functools.partial(resblock_dis_kernel, WC=WC, WNh=WNh)
    full = lambda n: (0, 0)

    out = pl.pallas_call(
        kernel,
        out_shape=jax.ShapeDtypeStruct((N * Ho, Wo * No), jnp.float32),
        grid=(nblk,),
        in_specs=[
            pl.BlockSpec((block_b * H, WC), lambda n: (n, 0)),    # x rows (bf16)
            pl.BlockSpec((3 * WC, WNh), full),                    # conv1 banded weights
            pl.BlockSpec((1, WNh), full),                         # conv1 bias (tiled)
            pl.BlockSpec((3 * WNh, Wo * No), full),               # conv2 banded+pooled weights
            pl.BlockSpec((WC, Wo * No), full),                    # shortcut pooled weight
            pl.BlockSpec((block_b * H, block_b * H), full),       # row shift-down op
            pl.BlockSpec((block_b * H, block_b * H), full),       # row shift-up op
            pl.BlockSpec((block_b * Ho, block_b * H), full),      # vertical pool op
            pl.BlockSpec((1, Wo * No), full),                     # output bias (b2+bs, tiled)
        ],
        out_specs=pl.BlockSpec((block_b * Ho, Wo * No), lambda n: (n, 0)),
        compiler_params=pltpu.CompilerParams(
            dimension_semantics=("parallel",)),                   # megacore when nblk > 1
    )(x_rows, w1c, b1r, w2c, wscp, sdn, sup, pv0, bor)

    return jnp.transpose(out.reshape(N, Ho, Wo, No), (0, 3, 1, 2))  # -> NCHW


# ----------------------------------------------------------------------------
# Deterministic parameter construction (mirrors the PyTorch __init__).
# ----------------------------------------------------------------------------
def xavier_uniform(key, shape_oihw, gain):
    out_c, in_c, kh, kw = shape_oihw
    fan_in, fan_out = in_c * kh * kw, out_c * kh * kw
    bound = gain * math.sqrt(6.0 / (fan_in + fan_out))
    return jax.random.uniform(key, shape_oihw, jnp.float32, -bound, bound)


def conv_bias_init(key, out_c, fan_in):
    bound = 1.0 / math.sqrt(fan_in)
    return jax.random.uniform(key, (out_c,), jnp.float32, -bound, bound)


def spectral_sigma(w2d, iters=50):
    # deterministic converged power iteration (== exact largest singular value)
    v = jnp.ones((w2d.shape[1],), jnp.float32) / math.sqrt(w2d.shape[1])
    for _ in range(iters):
        u = w2d @ v
        u = u / (jnp.linalg.norm(u) + 1e-12)
        v = w2d.T @ u
        v = v / (jnp.linalg.norm(v) + 1e-12)
    return u @ (w2d @ v)


# ----------------------------------------------------------------------------
# Plain-JAX reference (for in-script sanity checking only).
# ----------------------------------------------------------------------------
def reference_forward(x_nhwc, params):
    w1, b1, w2, b2, ws, bs = params
    dn = ("NHWC", "HWIO", "NHWC")
    h = jnp.maximum(x_nhwc, 0.0)
    h = jax.lax.conv_general_dilated(h, w1, (1, 1), ((1, 1), (1, 1)),
                                     dimension_numbers=dn) + b1.reshape(1, 1, 1, -1)
    h = jnp.maximum(h, 0.0)
    h = jax.lax.conv_general_dilated(h, w2, (1, 1), ((1, 1), (1, 1)),
                                     dimension_numbers=dn) + b2.reshape(1, 1, 1, -1)
    s = jax.lax.conv_general_dilated(
        x_nhwc, ws.reshape(1, 1, ws.shape[0], ws.shape[1]), (1, 1),
        ((0, 0), (0, 0)), dimension_numbers=dn) + bs.reshape(1, 1, 1, -1)
    y = h + s
    N, H, W, C = y.shape
    return y.reshape(N, H // 2, 2, W // 2, 2, C).mean(axis=(2, 4))


if __name__ == "__main__":
    # ResBlockDis(ni=4, no=8)  ->  nh = ni = 4, downsample = True
    ni, nh, no = 4, 4, 8
    N, H, W = 2, 16, 16

    key = jax.random.PRNGKey(0)
    ks = jax.random.split(key, 8)

    x = jax.random.normal(ks[0], (N, ni, H, W), jnp.float32)   # NCHW like PyTorch

    # PyTorch-layout (O, I, kh, kw) weights with the module's initializers
    w1_oihw = xavier_uniform(ks[1], (nh, ni, 3, 3), math.sqrt(2.0))
    w2_oihw = xavier_uniform(ks[2], (no, nh, 3, 3), math.sqrt(2.0))
    ws_oihw = xavier_uniform(ks[3], (no, ni, 1, 1), 1.0)
    b1 = conv_bias_init(ks[4], nh, ni * 9)
    b2 = conv_bias_init(ks[5], no, nh * 9)
    bs = conv_bias_init(ks[6], no, ni * 1)

    # spectral normalization (weight / sigma_max); PyTorch's stateful 1-step
    # power iteration is replaced by its deterministic converged limit.
    w1_sn = w1_oihw / spectral_sigma(w1_oihw.reshape(nh, -1))
    w2_sn = w2_oihw / spectral_sigma(w2_oihw.reshape(no, -1))
    ws_sn = ws_oihw / spectral_sigma(ws_oihw.reshape(no, -1))

    # OIHW -> HWIO for the NHWC kernel; 1x1 shortcut collapsed to (Cin, No)
    w1 = jnp.transpose(w1_sn, (2, 3, 1, 0))
    w2 = jnp.transpose(w2_sn, (2, 3, 1, 0))
    ws = jnp.transpose(ws_sn, (2, 3, 1, 0)).reshape(ni, no)

    params = (w1, b1, w2, b2, ws, bs)

    out = resblock_dis_forward(x, params)
    out = jax.block_until_ready(out)
    assert out.shape == (N, no, H // 2, W // 2), out.shape

    # Sanity check against a plain-JAX f32 conv reference.  Tolerance reflects
    # bf16 MXU operands plus the banded-weight / pooled-weight reassociation.
    x_nhwc = jnp.transpose(x, (0, 2, 3, 1))
    ref = jnp.transpose(reference_forward(x_nhwc, params), (0, 3, 1, 2))
    if not jnp.allclose(out, ref, rtol=3e-2, atol=3e-2):
        max_err = float(jnp.max(jnp.abs(out - ref)))
        raise AssertionError(f"Pallas kernel mismatch vs reference, max_err={max_err}")

    print("KERNEL_OK")
</pallas_src>

<mosaic_0001>
module attributes {stable_mosaic.version = 11 : i64} {
  func.func @resblock_dis_kernel(%arg0: i32, %arg1: memref<32x64xbf16, #tpu.memory_space<vmem>>, %arg2: memref<192x64xbf16, #tpu.memory_space<vmem>>, %arg3: memref<1x64xf32, #tpu.memory_space<vmem>>, %arg4: memref<192x64xbf16, #tpu.memory_space<vmem>>, %arg5: memref<64x64xbf16, #tpu.memory_space<vmem>>, %arg6: memref<32x32xbf16, #tpu.memory_space<vmem>>, %arg7: memref<32x32xbf16, #tpu.memory_space<vmem>>, %arg8: memref<16x32xbf16, #tpu.memory_space<vmem>>, %arg9: memref<1x64xf32, #tpu.memory_space<vmem>>, %arg10: memref<16x64xf32, #tpu.memory_space<vmem>>) attributes {dimension_semantics = [#tpu.dimension_semantics<parallel>], iteration_bounds = array<i64: 1>, scalar_prefetch = 0 : i64, scratch_operands = 0 : i64, tpu.core_type = #tpu.core_type<tc>, window_params = [{transform_indices = @transform_0, window_bounds = array<i64: 32, 64>}, {pipeline_mode = #tpu.pipeline_mode<synchronous>, transform_indices = @transform_1, window_bounds = array<i64: 192, 64>}, {pipeline_mode = #tpu.pipeline_mode<synchronous>, transform_indices = @transform_2, window_bounds = array<i64: 1, 64>}, {pipeline_mode = #tpu.pipeline_mode<synchronous>, transform_indices = @transform_3, window_bounds = array<i64: 192, 64>}, {pipeline_mode = #tpu.pipeline_mode<synchronous>, transform_indices = @transform_4, window_bounds = array<i64: 64, 64>}, {pipeline_mode = #tpu.pipeline_mode<synchronous>, transform_indices = @transform_5, window_bounds = array<i64: 32, 32>}, {pipeline_mode = #tpu.pipeline_mode<synchronous>, transform_indices = @transform_6, window_bounds = array<i64: 32, 32>}, {pipeline_mode = #tpu.pipeline_mode<synchronous>, transform_indices = @transform_7, window_bounds = array<i64: 16, 32>}, {pipeline_mode = #tpu.pipeline_mode<synchronous>, transform_indices = @transform_8, window_bounds = array<i64: 1, 64>}, {transform_indices = @transform_9, window_bounds = array<i64: 16, 64>}]} {
    %c0 = arith.constant 0 : index
    %c0_0 = arith.constant 0 : index
    %0 = vector.load %arg1[%c0, %c0_0] : memref<32x64xbf16, #tpu.memory_space<vmem>>, vector<32x64xbf16>
    %cst = arith.constant 0.000000e+00 : bf16
    %1 = vector.broadcast %cst : bf16 to vector<32x64xbf16>
    %2 = arith.maximumf %0, %1 : vector<32x64xbf16>
    %c0_1 = arith.constant 0 : index
    %c0_2 = arith.constant 0 : index
    %3 = vector.load %arg2[%c0_1, %c0_2] : memref<192x64xbf16, #tpu.memory_space<vmem>>, vector<64x64xbf16>
    %cst_3 = arith.constant dense<0.000000e+00> : vector<32x64xf32>
    %4 = tpu.matmul %2, %3, %cst_3 {dimension_numbers = #tpu.dot_dimension_numbers<[1], [0], [0], [1], [0, 0, 1, 1], [], []>} : vector<32x64xbf16>, vector<64x64xbf16>, vector<32x64xf32> -> vector<32x64xf32>
    %c64 = arith.constant 64 : index
    %c0_4 = arith.constant 0 : index
    %5 = vector.load %arg2[%c64, %c0_4] : memref<192x64xbf16, #tpu.memory_space<vmem>>, vector<64x64xbf16>
    %cst_5 = arith.constant dense<0.000000e+00> : vector<32x64xf32>
    %6 = tpu.matmul %2, %5, %cst_5 {dimension_numbers = #tpu.dot_dimension_numbers<[1], [0], [0], [1], [0, 0, 1, 1], [], []>} : vector<32x64xbf16>, vector<64x64xbf16>, vector<32x64xf32> -> vector<32x64xf32>
    %c128 = arith.constant 128 : index
    %c0_6 = arith.constant 0 : index
    %7 = vector.load %arg2[%c128, %c0_6] : memref<192x64xbf16, #tpu.memory_space<vmem>>, vector<64x64xbf16>
    %cst_7 = arith.constant dense<0.000000e+00> : vector<32x64xf32>
    %8 = tpu.matmul %2, %7, %cst_7 {dimension_numbers = #tpu.dot_dimension_numbers<[1], [0], [0], [1], [0, 0, 1, 1], [], []>} : vector<32x64xbf16>, vector<64x64xbf16>, vector<32x64xf32> -> vector<32x64xf32>
    %c0_8 = arith.constant 0 : index
    %c0_9 = arith.constant 0 : index
    %9 = vector.load %arg6[%c0_8, %c0_9] : memref<32x32xbf16, #tpu.memory_space<vmem>>, vector<32x32xbf16>
    %10 = arith.truncf %4 : vector<32x64xf32> to vector<32x64xbf16>
    %cst_10 = arith.constant dense<0.000000e+00> : vector<32x64xf32>
    %11 = tpu.matmul %9, %10, %cst_10 {dimension_numbers = #tpu.dot_dimension_numbers<[1], [0], [0], [1], [0, 0, 1, 1], [], []>} : vector<32x32xbf16>, vector<32x64xbf16>, vector<32x64xf32> -> vector<32x64xf32>
    %12 = arith.addf %6, %11 : vector<32x64xf32>
    %c0_11 = arith.constant 0 : index
    %c0_12 = arith.constant 0 : index
    %13 = vector.load %arg7[%c0_11, %c0_12] : memref<32x32xbf16, #tpu.memory_space<vmem>>, vector<32x32xbf16>
    %14 = arith.truncf %8 : vector<32x64xf32> to vector<32x64xbf16>
    %cst_13 = arith.constant dense<0.000000e+00> : vector<32x64xf32>
    %15 = tpu.matmul %13, %14, %cst_13 {dimension_numbers = #tpu.dot_dimension_numbers<[1], [0], [0], [1], [0, 0, 1, 1], [], []>} : vector<32x32xbf16>, vector<32x64xbf16>, vector<32x64xf32> -> vector<32x64xf32>
    %16 = arith.addf %12, %15 : vector<32x64xf32>
    %c0_14 = arith.constant 0 : index
    %c0_15 = arith.constant 0 : index
    %17 = vector.load %arg3[%c0_14, %c0_15] : memref<1x64xf32, #tpu.memory_space<vmem>>, vector<1x64xf32>
    %18 = vector.broadcast %17 : vector<1x64xf32> to vector<32x64xf32>
    %19 = arith.addf %16, %18 : vector<32x64xf32>
    %cst_16 = arith.constant 0.000000e+00 : f32
    %20 = vector.broadcast %cst_16 : f32 to vector<32x64xf32>
    %21 = arith.maximumf %19, %20 : vector<32x64xf32>
    %22 = arith.truncf %21 : vector<32x64xf32> to vector<32x64xbf16>
    %c0_17 = arith.constant 0 : index
    %c0_18 = arith.constant 0 : index
    %23 = vector.load %arg4[%c0_17, %c0_18] : memref<192x64xbf16, #tpu.memory_space<vmem>>, vector<64x64xbf16>
    %cst_19 = arith.constant dense<0.000000e+00> : vector<32x64xf32>
    %24 = tpu.matmul %22, %23, %cst_19 {dimension_numbers = #tpu.dot_dimension_numbers<[1], [0], [0], [1], [0, 0, 1, 1], [], []>} : vector<32x64xbf16>, vector<64x64xbf16>, vector<32x64xf32> -> vector<32x64xf32>
    %c64_20 = arith.constant 64 : index
    %c0_21 = arith.constant 0 : index
    %25 = vector.load %arg4[%c64_20, %c0_21] : memref<192x64xbf16, #tpu.memory_space<vmem>>, vector<64x64xbf16>
    %cst_22 = arith.constant dense<0.000000e+00> : vector<32x64xf32>
    %26 = tpu.matmul %22, %25, %cst_22 {dimension_numbers = #tpu.dot_dimension_numbers<[1], [0], [0], [1], [0, 0, 1, 1], [], []>} : vector<32x64xbf16>, vector<64x64xbf16>, vector<32x64xf32> -> vector<32x64xf32>
    %c128_23 = arith.constant 128 : index
    %c0_24 = arith.constant 0 : index
    %27 = vector.load %arg4[%c128_23, %c0_24] : memref<192x64xbf16, #tpu.memory_space<vmem>>, vector<64x64xbf16>
    %cst_25 = arith.constant dense<0.000000e+00> : vector<32x64xf32>
    %28 = tpu.matmul %22, %27, %cst_25 {dimension_numbers = #tpu.dot_dimension_numbers<[1], [0], [0], [1], [0, 0, 1, 1], [], []>} : vector<32x64xbf16>, vector<64x64xbf16>, vector<32x64xf32> -> vector<32x64xf32>
    %c0_26 = arith.constant 0 : index
    %c0_27 = arith.constant 0 : index
    %29 = vector.load %arg5[%c0_26, %c0_27] : memref<64x64xbf16, #tpu.memory_space<vmem>>, vector<64x64xbf16>
    %cst_28 = arith.constant dense<0.000000e+00> : vector<32x64xf32>
    %30 = tpu.matmul %0, %29, %cst_28 {dimension_numbers = #tpu.dot_dimension_numbers<[1], [0], [0], [1], [0, 0, 1, 1], [], []>} : vector<32x64xbf16>, vector<64x64xbf16>, vector<32x64xf32> -> vector<32x64xf32>
    %31 = arith.addf %26, %30 : vector<32x64xf32>
    %c0_29 = arith.constant 0 : index
    %c0_30 = arith.constant 0 : index
    %32 = vector.load %arg6[%c0_29, %c0_30] : memref<32x32xbf16, #tpu.memory_space<vmem>>, vector<32x32xbf16>
    %33 = arith.truncf %24 : vector<32x64xf32> to vector<32x64xbf16>
    %cst_31 = arith.constant dense<0.000000e+00> : vector<32x64xf32>
    %34 = tpu.matmul %32, %33, %cst_31 {dimension_numbers = #tpu.dot_dimension_numbers<[1], [0], [0], [1], [0, 0, 1, 1], [], []>} : vector<32x32xbf16>, vector<32x64xbf16>, vector<32x64xf32> -> vector<32x64xf32>
    %35 = arith.addf %31, %34 : vector<32x64xf32>
    %c0_32 = arith.constant 0 : index
    %c0_33 = arith.constant 0 : index
    %36 = vector.load %arg7[%c0_32, %c0_33] : memref<32x32xbf16, #tpu.memory_space<vmem>>, vector<32x32xbf16>
    %37 = arith.truncf %28 : vector<32x64xf32> to vector<32x64xbf16>
    %cst_34 = arith.constant dense<0.000000e+00> : vector<32x64xf32>
    %38 = tpu.matmul %36, %37, %cst_34 {dimension_numbers = #tpu.dot_dimension_numbers<[1], [0], [0], [1], [0, 0, 1, 1], [], []>} : vector<32x32xbf16>, vector<32x64xbf16>, vector<32x64xf32> -> vector<32x64xf32>
    %39 = arith.addf %35, %38 : vector<32x64xf32>
    %c0_35 = arith.constant 0 : index
    %c0_36 = arith.constant 0 : index
    %40 = vector.load %arg8[%c0_35, %c0_36] : memref<16x32xbf16, #tpu.memory_space<vmem>>, vector<16x32xbf16>
    %41 = arith.truncf %39 : vector<32x64xf32> to vector<32x64xbf16>
    %cst_37 = arith.constant dense<0.000000e+00> : vector<16x64xf32>
    %42 = tpu.matmul %40, %41, %cst_37 {dimension_numbers = #tpu.dot_dimension_numbers<[1], [0], [0], [1], [0, 0, 1, 1], [], []>} : vector<16x32xbf16>, vector<32x64xbf16>, vector<16x64xf32> -> vector<16x64xf32>
    %c0_38 = arith.constant 0 : index
    %c0_39 = arith.constant 0 : index
    %43 = vector.load %arg9[%c0_38, %c0_39] : memref<1x64xf32, #tpu.memory_space<vmem>>, vector<1x64xf32>
    %44 = vector.broadcast %43 : vector<1x64xf32> to vector<16x64xf32>
    %45 = arith.addf %42, %44 : vector<16x64xf32>
    %c0_40 = arith.constant 0 : index
    %c0_41 = arith.constant 0 : index
    %46 = vector.load %arg10[%c0_40, %c0_41] : memref<16x64xf32, #tpu.memory_space<vmem>>, vector<16x64xf32>
    tpu.vector_store %arg10[%c0_40, %c0_41], %45 {strides = array<i32>} : memref<16x64xf32, #tpu.memory_space<vmem>>, vector<16x64xf32>,
    return
  }
  func.func @transform_0(%arg0: i32) -> (i32, i32) {
    %c0_i32 = arith.constant 0 : i32
    %c0_i32_0 = arith.constant 0 : i32
    return %arg0, %c0_i32 : i32, i32
  }
  func.func @transform_1(%arg0: i32) -> (i32, i32) {
    %c0_i32 = arith.constant 0 : i32
    %c0_i32_0 = arith.constant 0 : i32
    %c0_i32_1 = arith.constant 0 : i32
    return %c0_i32, %c0_i32_0 : i32, i32
  }
  func.func @transform_2(%arg0: i32) -> (i32, i32) {
    %c0_i32 = arith.constant 0 : i32
    %c0_i32_0 = arith.constant 0 : i32
    %c0_i32_1 = arith.constant 0 : i32
    return %c0_i32, %c0_i32_0 : i32, i32
  }
  func.func @transform_3(%arg0: i32) -> (i32, i32) {
    %c0_i32 = arith.constant 0 : i32
    %c0_i32_0 = arith.constant 0 : i32
    %c0_i32_1 = arith.constant 0 : i32
    return %c0_i32, %c0_i32_0 : i32, i32
  }
  func.func @transform_4(%arg0: i32) -> (i32, i32) {
    %c0_i32 = arith.constant 0 : i32
    %c0_i32_0 = arith.constant 0 : i32
    %c0_i32_1 = arith.constant 0 : i32
    return %c0_i32, %c0_i32_0 : i32, i32
  }
  func.func @transform_5(%arg0: i32) -> (i32, i32) {
    %c0_i32 = arith.constant 0 : i32
    %c0_i32_0 = arith.constant 0 : i32
    %c0_i32_1 = arith.constant 0 : i32
    return %c0_i32, %c0_i32_0 : i32, i32
  }
  func.func @transform_6(%arg0: i32) -> (i32, i32) {
    %c0_i32 = arith.constant 0 : i32
    %c0_i32_0 = arith.constant 0 : i32
    %c0_i32_1 = arith.constant 0 : i32
    return %c0_i32, %c0_i32_0 : i32, i32
  }
  func.func @transform_7(%arg0: i32) -> (i32, i32) {
    %c0_i32 = arith.constant 0 : i32
    %c0_i32_0 = arith.constant 0 : i32
    %c0_i32_1 = arith.constant 0 : i32
    return %c0_i32, %c0_i32_0 : i32, i32
  }
  func.func @transform_8(%arg0: i32) -> (i32, i32) {
    %c0_i32 = arith.constant 0 : i32
    %c0_i32_0 = arith.constant 0 : i32
    %c0_i32_1 = arith.constant 0 : i32
    return %c0_i32, %c0_i32_0 : i32, i32
  }
  func.func @transform_9(%arg0: i32) -> (i32, i32) {
    %c0_i32 = arith.constant 0 : i32
    %c0_i32_0 = arith.constant 0 : i32
    return %arg0, %c0_i32 : i32, i32
  }
}

</mosaic_0001>

<llo_original>
// kernel: tpu_custom_call.1
$region0: #{tpu_custom_call.1}
  #allocation0 [shape = 'u32[]', space=smem, size = 0x4, offset = 0x4, fixed_abs, tag = 'smem constant byte address 0x4 - core index']
  #allocation1 [shape = 'u32[72,128]{1,0:T(1,128)}', space=vmem, size = 0x9000, scoped, tag = 'internal scratch']
  %s0 = inlined_call_operand.vmem [shape: bf16[32,64], index: 0, kind: input, shape index: {}]
  %s1 = inlined_call_operand.vmem [shape: bf16[192,64], index: 1, kind: input, shape index: {}]
  %s2 = inlined_call_operand.vmem [shape: f32[1,64], index: 2, kind: input, shape index: {}]
  %s3 = inlined_call_operand.vmem [shape: bf16[192,64], index: 3, kind: input, shape index: {}]
  %s4 = inlined_call_operand.vmem [shape: bf16[64,64], index: 4, kind: input, shape index: {}]
  %s5 = inlined_call_operand.vmem [shape: bf16[32,32], index: 5, kind: input, shape index: {}]
  %s6 = inlined_call_operand.vmem [shape: bf16[32,32], index: 6, kind: input, shape index: {}]
  %s7 = inlined_call_operand.vmem [shape: bf16[16,32], index: 7, kind: input, shape index: {}]
  %s8 = inlined_call_operand.vmem [shape: f32[1,64], index: 8, kind: input, shape index: {}]
  %s9 = inlined_call_operand.hbm [shape: f32[16,64], index: 9, kind: output, shape index: {}]
  %s10 = sld [smem:[#allocation0]]
  $region46: #{tpu_custom_call.1} parent=0
    _
  %s12 = ssub.s32 1, %s10
  %s13 = scalar_select 0, %s12, %s10
  $region1: #{tpu_custom_call.1} parent=0
    #allocation2 [shape = 'u8[8192]{0}', space=vmem, size = 0x2000, scoped, tag = 'output window, operand 0, single buffered']
    #allocation3 [shape = 's32[1]{0}', space=sflag, size = 0x4, scoped, tag = 'scoped memory for tpu_custom_call.1']
    %14 = vsyncpa [#allocation3], 0
    // Predicated region
    $region2: #{tpu_custom_call.1} parent=1 // pred_check
      _
    $region3: #{tpu_custom_call.1} parent=1 // pred_check_branch
      %16 = sbr.rel (0) target = $region5
    $region4: #{tpu_custom_call.1} parent=1 // pred_region
      _
    $region5: #{tpu_custom_call.1} parent=1 // pred_fallthru
      _
    // Predicated region
    $region6: #{tpu_custom_call.1} parent=1 // pred_check
      _
    $region7: #{tpu_custom_call.1} parent=1 // pred_check_branch
      %18 = sbr.rel (0) target = $region9
    $region8: #{tpu_custom_call.1} parent=1 // pred_region
      _
    $region9: #{tpu_custom_call.1} parent=1 // pred_fallthru
      _
    // Predicated region
    $region10: #{tpu_custom_call.1} parent=1 // pred_check
      _
    $region11: #{tpu_custom_call.1} parent=1 // pred_check_branch
      %20 = sbr.rel (0) target = $region13
    $region12: #{tpu_custom_call.1} parent=1 // pred_region
      _
    $region13: #{tpu_custom_call.1} parent=1 // pred_fallthru
      _
    // Predicated region
    $region14: #{tpu_custom_call.1} parent=1 // pred_check
      _
    $region15: #{tpu_custom_call.1} parent=1 // pred_check_branch
      %22 = sbr.rel (0) target = $region17
    $region16: #{tpu_custom_call.1} parent=1 // pred_region
      _
    $region17: #{tpu_custom_call.1} parent=1 // pred_fallthru
      _
    // Predicated region
    $region18: #{tpu_custom_call.1} parent=1 // pred_check
      _
    $region19: #{tpu_custom_call.1} parent=1 // pred_check_branch
      %24 = sbr.rel (0) target = $region21
    $region20: #{tpu_custom_call.1} parent=1 // pred_region
      _
    $region21: #{tpu_custom_call.1} parent=1 // pred_fallthru
      _
    // Predicated region
    $region22: #{tpu_custom_call.1} parent=1 // pred_check
      _
    $region23: #{tpu_custom_call.1} parent=1 // pred_check_branch
      %26 = sbr.rel (0) target = $region25
    $region24: #{tpu_custom_call.1} parent=1 // pred_region
      _
    $region25: #{tpu_custom_call.1} parent=1 // pred_fallthru
      _
    // Predicated region
    $region26: #{tpu_custom_call.1} parent=1 // pred_check
      _
    $region27: #{tpu_custom_call.1} parent=1 // pred_check_branch
      %28 = sbr.rel (0) target = $region29
    $region28: #{tpu_custom_call.1} parent=1 // pred_region
      _
    $region29: #{tpu_custom_call.1} parent=1 // pred_fallthru
      _
    // Predicated region
    $region30: #{tpu_custom_call.1} parent=1 // pred_check
      _
    $region31: #{tpu_custom_call.1} parent=1 // pred_check_branch
      %30 = sbr.rel (0) target = $region33
    $region32: #{tpu_custom_call.1} parent=1 // pred_region
      _
    $region33: #{tpu_custom_call.1} parent=1 // pred_fallthru
      _
    // Predicated region
    $region34: #{tpu_custom_call.1} parent=1 // pred_check
      _
    $region35: #{tpu_custom_call.1} parent=1 // pred_check_branch
      %32 = sbr.rel (0) target = $region37
    $region36: #{tpu_custom_call.1} parent=1 // pred_region
      _
    $region37: #{tpu_custom_call.1} parent=1 // pred_fallthru
      _
    %v34 = vld [vmem:[%s0] sm:$0xf]
    %v35 = vld [vmem:[%s0 + $0x4] sm:$0xf]
    %v36 = vld [vmem:[%s0 + $0x8] sm:$0xf]
    %v37 = vld [vmem:[%s0 + $0xc] sm:$0xf]
    %v38 = vunpack.c.l.bf16 %v34
    %v39 = vunpack.c.l.bf16 %v35
    %v40 = vunpack.c.l.bf16 %v36
    %v41 = vunpack.c.l.bf16 %v37
    %v42 = vmax.f32 %v38, 0.0
    %v43 = vmax.f32 %v39, 0.0
    %v44 = vmax.f32 %v40, 0.0
    %v45 = vmax.f32 %v41, 0.0
    %v46 = vpack.c.bf16 %v43, %v42
    %v47 = vpack.c.bf16 %v45, %v44
    %v48 = vld [vmem:[%s1] sm:$0xf]
    %v49 = vld [vmem:[%s1 + $0x4] sm:$0xf]
    %v50 = vld [vmem:[%s1 + $0x8] sm:$0xf]
    %v51 = vld [vmem:[%s1 + $0xc] sm:$0xf]
    %v52 = vld [vmem:[%s1 + $0x10] sm:$0xf]
    %v53 = vld [vmem:[%s1 + $0x14] sm:$0xf]
    %v54 = vld [vmem:[%s1 + $0x18] sm:$0xf]
    %v55 = vld [vmem:[%s1 + $0x1c] sm:$0xf]
    %v64 = vunpack.c.l.b16 %v48
    %v65 = vunpack.c.l.b16 %v49
    %v66 = vunpack.c.l.b16 %v50
    %v67 = vunpack.c.l.b16 %v51
    %v68 = vunpack.c.l.b16 %v52
    %v69 = vunpack.c.l.b16 %v53
    %v70 = vunpack.c.l.b16 %v54
    %v71 = vunpack.c.l.b16 %v55
    %v72 = vpack.c.b16 %v65, %v64
    %v73 = vpack.c.b16 %v67, %v66
    %v74 = vpack.c.b16 %v69, %v68
    %v75 = vpack.c.b16 %v71, %v70
    %vm80 = vcmask 523264
    %v82 = vsel %vm80, %v46, 0
    %v85 = vsel %vm80, %v47, 0
    %87 = vmatpush.bf16.msra.mxu0 0
    %88 = vmatpush.bf16.msra.mxu0 0
    %89 = vmatpush.bf16.msra.mxu0 0
    %90 = vmatpush.bf16.msra.mxu0 0
    %91 = vmatpush.bf16.msra.mxu0 %v75
    %92 = vmatpush.bf16.msra.mxu0 %v74
    %93 = vmatpush.bf16.msra.mxu0 %v73
    %94 = vmatpush.bf16.msra.mxu0 %v72
    %95 = vmatmul.bf16.gmra.mxu0 %v82
    %v96 = vpop.f32.mrf.mxu0
    %v97 = vadd.f32 0.0, %v96
    %v98 = vpop.f32.mrf.mxu0
    %v99 = vadd.f32 0.0, %v98
    %100 = vmatmul.bf16.gmra.mxu0 %v85
    %v101 = vpop.f32.mrf.mxu0
    %v102 = vadd.f32 0.0, %v101
    %v103 = vpop.f32.mrf.mxu0
    %v104 = vadd.f32 0.0, %v103
    %105 = vdwg.mxu0
    %v106 = vld [vmem:[%s1 + $0x20] sm:$0xf]
    %v107 = vld [vmem:[%s1 + $0x24] sm:$0xf]
    %v108 = vld [vmem:[%s1 + $0x28] sm:$0xf]
    %v109 = vld [vmem:[%s1 + $0x2c] sm:$0xf]
    %v110 = vld [vmem:[%s1 + $0x30] sm:$0xf]
    %v111 = vld [vmem:[%s1 + $0x34] sm:$0xf]
    %v112 = vld [vmem:[%s1 + $0x38] sm:$0xf]
    %v113 = vld [vmem:[%s1 + $0x3c] sm:$0xf]
    %v114 = vld [vmem:[%s1 + $0x40] sm:$0xf]
    %v115 = vld [vmem:[%s1 + $0x44] sm:$0xf]
    %v116 = vld [vmem:[%s1 + $0x48] sm:$0xf]
    %v117 = vld [vmem:[%s1 + $0x4c] sm:$0xf]
    %v118 = vld [vmem:[%s1 + $0x50] sm:$0xf]
    %v119 = vld [vmem:[%s1 + $0x54] sm:$0xf]
    %v120 = vld [vmem:[%s1 + $0x58] sm:$0xf]
    %v121 = vld [vmem:[%s1 + $0x5c] sm:$0xf]
    %v130 = vunpack.c.l.b16 %v114
    %v131 = vunpack.c.l.b16 %v115
    %v132 = vunpack.c.l.b16 %v116
    %v133 = vunpack.c.l.b16 %v117
    %v134 = vunpack.c.l.b16 %v118
    %v135 = vunpack.c.l.b16 %v119
    %v136 = vunpack.c.l.b16 %v120
    %v137 = vunpack.c.l.b16 %v121
    %v138 = vpack.c.b16 %v131, %v130
    %v139 = vpack.c.b16 %v133, %v132
    %v140 = vpack.c.b16 %v135, %v134
    %v141 = vpack.c.b16 %v137, %v136
    %146 = vmatpush.bf16.msra.mxu0 0
    %147 = vmatpush.bf16.msra.mxu0 0
    %148 = vmatpush.bf16.msra.mxu0 0
    %149 = vmatpush.bf16.msra.mxu0 0
    %150 = vmatpush.bf16.msra.mxu0 %v141
    %151 = vmatpush.bf16.msra.mxu0 %v140
    %152 = vmatpush.bf16.msra.mxu0 %v139
    %153 = vmatpush.bf16.msra.mxu0 %v138
    %154 = vmatmul.bf16.gmra.mxu0 %v82
    %v155 = vpop.f32.mrf.mxu0
    %v156 = vadd.f32 0.0, %v155
    %v157 = vpop.f32.mrf.mxu0
    %v158 = vadd.f32 0.0, %v157
    %159 = vmatmul.bf16.gmra.mxu0 %v85
    %v160 = vpop.f32.mrf.mxu0
    %v161 = vadd.f32 0.0, %v160
    %v162 = vpop.f32.mrf.mxu0
    %v163 = vadd.f32 0.0, %v162
    %164 = vdwg.mxu0
    %v165 = vld [vmem:[%s5] sm:$0xf]
    %v166 = vld [vmem:[%s5 + $0x4] sm:$0xf]
    %v167 = vld [vmem:[%s5 + $0x8] sm:$0xf]
    %v168 = vld [vmem:[%s5 + $0xc] sm:$0xf]
    %v169 = vpack.c.bf16 %v99, %v97
    %v170 = vpack.c.bf16 %v104, %v102
    %v175 = vunpack.c.l.b16 %v165
    %v176 = vunpack.c.l.b16 %v166
    %v177 = vunpack.c.l.b16 %v167
    %v178 = vunpack.c.l.b16 %v168
    %v179 = vpack.c.b16 %v176, %v175
    %v180 = vpack.c.b16 %v178, %v177
    %vm181 = vcmask 261120
    %v183 = vsel %vm181, %v179, 0
    %v186 = vsel %vm181, %v180, 0
    %188 = vmatpush.bf16.msra.mxu0 0
    %189 = vmatpush.bf16.msra.mxu0 0
    %190 = vmatpush.bf16.msra.mxu0 0
    %191 = vmatpush.bf16.msra.mxu0 0
    %192 = vmatpush.bf16.msra.mxu0 0
    %193 = vmatpush.bf16.msra.mxu0 0
    %194 = vmatpush.bf16.msra.mxu0 %v170
    %195 = vmatpush.bf16.msra.mxu0 %v169
    %196 = vmatmul.bf16.gmra.mxu0 %v183
    %v197 = vpop.f32.mrf.mxu0
    %v198 = vadd.f32 0.0, %v197
    %v199 = vpop.f32.mrf.mxu0
    %v200 = vadd.f32 0.0, %v199
    %201 = vmatmul.bf16.gmra.mxu0 %v186
    %v202 = vpop.f32.mrf.mxu0
    %v203 = vadd.f32 0.0, %v202
    %v204 = vpop.f32.mrf.mxu0
    %v205 = vadd.f32 0.0, %v204
    %206 = vdwg.mxu0
    %v215 = vunpack.c.l.b16 %v106
    %v216 = vunpack.c.l.b16 %v107
    %v217 = vunpack.c.l.b16 %v108
    %v218 = vunpack.c.l.b16 %v109
    %v219 = vunpack.c.l.b16 %v110
    %v220 = vunpack.c.l.b16 %v111
    %v221 = vunpack.c.l.b16 %v112
    %v222 = vunpack.c.l.b16 %v113
    %v223 = vpack.c.b16 %v216, %v215
    %v224 = vpack.c.b16 %v218, %v217
    %v225 = vpack.c.b16 %v220, %v219
    %v226 = vpack.c.b16 %v222, %v221
    %231 = vmatpush.bf16.msra.mxu0 0
    %232 = vmatpush.bf16.msra.mxu0 0
    %233 = vmatpush.bf16.msra.mxu0 0
    %234 = vmatpush.bf16.msra.mxu0 0
    %235 = vmatpush.bf16.msra.mxu0 %v226
    %236 = vmatpush.bf16.msra.mxu0 %v225
    %237 = vmatpush.bf16.msra.mxu0 %v224
    %238 = vmatpush.bf16.msra.mxu0 %v223
    %239 = vmatmul.bf16.gmra.mxu0 %v82
    %v240 = vpop.f32.mrf.mxu0
    %v241 = vadd.f32 %v198, %v240
    %v242 = vpop.f32.mrf.mxu0
    %v243 = vadd.f32 %v200, %v242
    %244 = vmatmul.bf16.gmra.mxu0 %v85
    %v245 = vpop.f32.mrf.mxu0
    %v246 = vadd.f32 %v203, %v245
    %v247 = vpop.f32.mrf.mxu0
    %v248 = vadd.f32 %v205, %v247
    %249 = vdwg.mxu0
    %v250 = vld [vmem:[%s6] sm:$0xf]
    %v251 = vld [vmem:[%s6 + $0x4] sm:$0xf]
    %v252 = vld [vmem:[%s6 + $0x8] sm:$0xf]
    %v253 = vld [vmem:[%s6 + $0xc] sm:$0xf]
    %v254 = vpack.c.bf16 %v158, %v156
    %v255 = vpack.c.bf16 %v163, %v161
    %v260 = vunpack.c.l.b16 %v250
    %v261 = vunpack.c.l.b16 %v251
    %v262 = vunpack.c.l.b16 %v252
    %v263 = vunpack.c.l.b16 %v253
    %v264 = vpack.c.b16 %v261, %v260
    %v265 = vpack.c.b16 %v263, %v262
    %v267 = vsel %vm181, %v264, 0
    %v270 = vsel %vm181, %v265, 0
    %272 = vmatpush.bf16.msra.mxu0 0
    %273 = vmatpush.bf16.msra.mxu0 0
    %274 = vmatpush.bf16.msra.mxu0 0
    %275 = vmatpush.bf16.msra.mxu0 0
    %276 = vmatpush.bf16.msra.mxu0 0
    %277 = vmatpush.bf16.msra.mxu0 0
    %278 = vmatpush.bf16.msra.mxu0 %v255
    %279 = vmatpush.bf16.msra.mxu0 %v254
    %280 = vmatmul.bf16.gmra.mxu0 %v267
    %v281 = vpop.f32.mrf.mxu0
    %v282 = vadd.f32 0.0, %v281
    %v283 = vpop.f32.mrf.mxu0
    %v284 = vadd.f32 0.0, %v283
    %285 = vmatmul.bf16.gmra.mxu0 %v270
    %v286 = vpop.f32.mrf.mxu0
    %v287 = vadd.f32 0.0, %v286
    %v288 = vpop.f32.mrf.mxu0
    %v289 = vadd.f32 0.0, %v288
    %290 = vdwg.mxu0
    %v291 = vadd.f32 %v241, %v282
    %v292 = vadd.f32 %v243, %v284
    %v293 = vadd.f32 %v246, %v287
    %v294 = vadd.f32 %v248, %v289
    %v295 = vld [vmem:[%s2] sm:$0x1]
    %v297 = vperm.slane %v295, 0
    %v299 = vadd.f32 %v291, %v297
    %v300 = vadd.f32 %v292, %v297
    %v301 = vadd.f32 %v293, %v297
    %v302 = vadd.f32 %v294, %v297
    %v303 = vmax.f32 %v299, 0.0
    %v304 = vmax.f32 %v300, 0.0
    %v305 = vmax.f32 %v301, 0.0
    %v306 = vmax.f32 %v302, 0.0
    %v307 = vpack.c.bf16 %v304, %v303
    %v308 = vpack.c.bf16 %v306, %v305
    %v309 = vld [vmem:[%s3] sm:$0xf]
    %v310 = vld [vmem:[%s3 + $0x4] sm:$0xf]
    %v311 = vld [vmem:[%s3 + $0x8] sm:$0xf]
    %v312 = vld [vmem:[%s3 + $0xc] sm:$0xf]
    %v313 = vld [vmem:[%s3 + $0x10] sm:$0xf]
    %v314 = vld [vmem:[%s3 + $0x14] sm:$0xf]
    %v315 = vld [vmem:[%s3 + $0x18] sm:$0xf]
    %v316 = vld [vmem:[%s3 + $0x1c] sm:$0xf]
    %v325 = vunpack.c.l.b16 %v309
    %v326 = vunpack.c.l.b16 %v310
    %v327 = vunpack.c.l.b16 %v311
    %v328 = vunpack.c.l.b16 %v312
    %v329 = vunpack.c.l.b16 %v313
    %v330 = vunpack.c.l.b16 %v314
    %v331 = vunpack.c.l.b16 %v315
    %v332 = vunpack.c.l.b16 %v316
    %v333 = vpack.c.b16 %v326, %v325
    %v334 = vpack.c.b16 %v328, %v327
    %v335 = vpack.c.b16 %v330, %v329
    %v336 = vpack.c.b16 %v332, %v331
    %v342 = vsel %vm80, %v307, 0
    %v345 = vsel %vm80, %v308, 0
    %347 = vmatpush.bf16.msra.mxu0 0
    %348 = vmatpush.bf16.msra.mxu0 0
    %349 = vmatpush.bf16.msra.mxu0 0
    %350 = vmatpush.bf16.msra.mxu0 0
    %351 = vmatpush.bf16.msra.mxu0 %v336
    %352 = vmatpush.bf16.msra.mxu0 %v335
    %353 = vmatpush.bf16.msra.mxu0 %v334
    %354 = vmatpush.bf16.msra.mxu0 %v333
    %355 = vmatmul.bf16.gmra.mxu0 %v342
    %v356 = vpop.f32.mrf.mxu0
    %v357 = vadd.f32 0.0, %v356
    %v358 = vpop.f32.mrf.mxu0
    %v359 = vadd.f32 0.0, %v358
    %360 = vmatmul.bf16.gmra.mxu0 %v345
    %v361 = vpop.f32.mrf.mxu0
    %v362 = vadd.f32 0.0, %v361
    %v363 = vpop.f32.mrf.mxu0
    %v364 = vadd.f32 0.0, %v363
    %365 = vdwg.mxu0
    %v366 = vld [vmem:[%s3 + $0x20] sm:$0xf]
    %v367 = vld [vmem:[%s3 + $0x24] sm:$0xf]
    %v368 = vld [vmem:[%s3 + $0x28] sm:$0xf]
    %v369 = vld [vmem:[%s3 + $0x2c] sm:$0xf]
    %v370 = vld [vmem:[%s3 + $0x30] sm:$0xf]
    %v371 = vld [vmem:[%s3 + $0x34] sm:$0xf]
    %v372 = vld [vmem:[%s3 + $0x38] sm:$0xf]
    %v373 = vld [vmem:[%s3 + $0x3c] sm:$0xf]
    %v374 = vld [vmem:[%s3 + $0x40] sm:$0xf]
    %v375 = vld [vmem:[%s3 + $0x44] sm:$0xf]
    %v376 = vld [vmem:[%s3 + $0x48] sm:$0xf]
    %v377 = vld [vmem:[%s3 + $0x4c] sm:$0xf]
    %v378 = vld [vmem:[%s3 + $0x50] sm:$0xf]
    %v379 = vld [vmem:[%s3 + $0x54] sm:$0xf]
    %v380 = vld [vmem:[%s3 + $0x58] sm:$0xf]
    %v381 = vld [vmem:[%s3 + $0x5c] sm:$0xf]
    %v390 = vunpack.c.l.b16 %v374
    %v391 = vunpack.c.l.b16 %v375
    %v392 = vunpack.c.l.b16 %v376
    %v393 = vunpack.c.l.b16 %v377
    %v394 = vunpack.c.l.b16 %v378
    %v395 = vunpack.c.l.b16 %v379
    %v396 = vunpack.c.l.b16 %v380
    %v397 = vunpack.c.l.b16 %v381
    %v398 = vpack.c.b16 %v391, %v390
    %v399 = vpack.c.b16 %v393, %v392
    %v400 = vpack.c.b16 %v395, %v394
    %v401 = vpack.c.b16 %v397, %v396
    %406 = vmatpush.bf16.msra.mxu0 0
    %407 = vmatpush.bf16.msra.mxu0 0
    %408 = vmatpush.bf16.msra.mxu0 0
    %409 = vmatpush.bf16.msra.mxu0 0
    %410 = vmatpush.bf16.msra.mxu0 %v401
    %411 = vmatpush.bf16.msra.mxu0 %v400
    %412 = vmatpush.bf16.msra.mxu0 %v399
    %413 = vmatpush.bf16.msra.mxu0 %v398
    %414 = vmatmul.bf16.gmra.mxu0 %v342
    %v415 = vpop.f32.mrf.mxu0
    %v416 = vadd.f32 0.0, %v415
    %v417 = vpop.f32.mrf.mxu0
    %v418 = vadd.f32 0.0, %v417
    %419 = vmatmul.bf16.gmra.mxu0 %v345
    %v420 = vpop.f32.mrf.mxu0
    %v421 = vadd.f32 0.0, %v420
    %v422 = vpop.f32.mrf.mxu0
    %v423 = vadd.f32 0.0, %v422
    %424 = vdwg.mxu0
    %v425 = vld [vmem:[%s4] sm:$0xf]
    %v426 = vld [vmem:[%s4 + $0x4] sm:$0xf]
    %v427 = vld [vmem:[%s4 + $0x8] sm:$0xf]
    %v428 = vld [vmem:[%s4 + $0xc] sm:$0xf]
    %v429 = vld [vmem:[%s4 + $0x10] sm:$0xf]
    %v430 = vld [vmem:[%s4 + $0x14] sm:$0xf]
    %v431 = vld [vmem:[%s4 + $0x18] sm:$0xf]
    %v432 = vld [vmem:[%s4 + $0x1c] sm:$0xf]
    %v437 = vunpack.c.l.b16 %v34
    %v438 = vunpack.c.l.b16 %v35
    %v439 = vunpack.c.l.b16 %v36
    %v440 = vunpack.c.l.b16 %v37
    %v441 = vpack.c.b16 %v438, %v437
    %v442 = vpack.c.b16 %v440, %v439
    %v451 = vunpack.c.l.b16 %v425
    %v452 = vunpack.c.l.b16 %v426
    %v453 = vunpack.c.l.b16 %v427
    %v454 = vunpack.c.l.b16 %v428
    %v455 = vunpack.c.l.b16 %v429
    %v456 = vunpack.c.l.b16 %v430
    %v457 = vunpack.c.l.b16 %v431
    %v458 = vunpack.c.l.b16 %v432
    %v459 = vpack.c.b16 %v452, %v451
    %v460 = vpack.c.b16 %v454, %v453
    %v461 = vpack.c.b16 %v456, %v455
    %v462 = vpack.c.b16 %v458, %v457
    %v468 = vsel %vm80, %v441, 0
    %v471 = vsel %vm80, %v442, 0
    %473 = vmatpush.bf16.msra.mxu0 0
    %474 = vmatpush.bf16.msra.mxu0 0
    %475 = vmatpush.bf16.msra.mxu0 0
    %476 = vmatpush.bf16.msra.mxu0 0
    %477 = vmatpush.bf16.msra.mxu0 %v462
    %478 = vmatpush.bf16.msra.mxu0 %v461
    %479 = vmatpush.bf16.msra.mxu0 %v460
    %480 = vmatpush.bf16.msra.mxu0 %v459
    %481 = vmatmul.bf16.gmra.mxu0 %v468
    %v482 = vpop.f32.mrf.mxu0
    %v483 = vadd.f32 0.0, %v482
    %v484 = vpop.f32.mrf.mxu0
    %v485 = vadd.f32 0.0, %v484
    %486 = vmatmul.bf16.gmra.mxu0 %v471
    %v487 = vpop.f32.mrf.mxu0
    %v488 = vadd.f32 0.0, %v487
    %v489 = vpop.f32.mrf.mxu0
    %v490 = vadd.f32 0.0, %v489
    %491 = vdwg.mxu0
    %v500 = vunpack.c.l.b16 %v366
    %v501 = vunpack.c.l.b16 %v367
    %v502 = vunpack.c.l.b16 %v368
    %v503 = vunpack.c.l.b16 %v369
    %v504 = vunpack.c.l.b16 %v370
    %v505 = vunpack.c.l.b16 %v371
    %v506 = vunpack.c.l.b16 %v372
    %v507 = vunpack.c.l.b16 %v373
    %v508 = vpack.c.b16 %v501, %v500
    %v509 = vpack.c.b16 %v503, %v502
    %v510 = vpack.c.b16 %v505, %v504
    %v511 = vpack.c.b16 %v507, %v506
    %516 = vmatpush.bf16.msra.mxu0 0
    %517 = vmatpush.bf16.msra.mxu0 0
    %518 = vmatpush.bf16.msra.mxu0 0
    %519 = vmatpush.bf16.msra.mxu0 0
    %520 = vmatpush.bf16.msra.mxu0 %v511
    %521 = vmatpush.bf16.msra.mxu0 %v510
    %522 = vmatpush.bf16.msra.mxu0 %v509
    %523 = vmatpush.bf16.msra.mxu0 %v508
    %524 = vmatmul.bf16.gmra.mxu0 %v342
    %v525 = vpop.f32.mrf.mxu0
    %v526 = vadd.f32 %v483, %v525
    %v527 = vpop.f32.mrf.mxu0
    %v528 = vadd.f32 %v485, %v527
    %529 = vmatmul.bf16.gmra.mxu0 %v345
    %v530 = vpop.f32.mrf.mxu0
    %v531 = vadd.f32 %v488, %v530
    %v532 = vpop.f32.mrf.mxu0
    %v533 = vadd.f32 %v490, %v532
    %534 = vdwg.mxu0
    %v535 = vpack.c.bf16 %v359, %v357
    %v536 = vpack.c.bf16 %v364, %v362
    %537 = vmatpush.bf16.msra.mxu0 0
    %538 = vmatpush.bf16.msra.mxu0 0
    %539 = vmatpush.bf16.msra.mxu0 0
    %540 = vmatpush.bf16.msra.mxu0 0
    %541 = vmatpush.bf16.msra.mxu0 0
    %542 = vmatpush.bf16.msra.mxu0 0
    %543 = vmatpush.bf16.msra.mxu0 %v536
    %544 = vmatpush.bf16.msra.mxu0 %v535
    %545 = vmatmul.bf16.gmra.mxu0 %v183
    %v546 = vpop.f32.mrf.mxu0
    %v547 = vadd.f32 0.0, %v546
    %v548 = vpop.f32.mrf.mxu0
    %v549 = vadd.f32 0.0, %v548
    %550 = vmatmul.bf16.gmra.mxu0 %v186
    %v551 = vpop.f32.mrf.mxu0
    %v552 = vadd.f32 0.0, %v551
    %v553 = vpop.f32.mrf.mxu0
    %v554 = vadd.f32 0.0, %v553
    %555 = vdwg.mxu0
    %v556 = vadd.f32 %v526, %v547
    %v557 = vadd.f32 %v528, %v549
    %v558 = vadd.f32 %v531, %v552
    %v559 = vadd.f32 %v533, %v554
    %v560 = vpack.c.bf16 %v418, %v416
    %v561 = vpack.c.bf16 %v423, %v421
    %562 = vmatpush.bf16.msra.mxu0 0
    %563 = vmatpush.bf16.msra.mxu0 0
    %564 = vmatpush.bf16.msra.mxu0 0
    %565 = vmatpush.bf16.msra.mxu0 0
    %566 = vmatpush.bf16.msra.mxu0 0
    %567 = vmatpush.bf16.msra.mxu0 0
    %568 = vmatpush.bf16.msra.mxu0 %v561
    %569 = vmatpush.bf16.msra.mxu0 %v560
    %570 = vmatmul.bf16.gmra.mxu0 %v267
    %v571 = vpop.f32.mrf.mxu0
    %v572 = vadd.f32 0.0, %v571
    %v573 = vpop.f32.mrf.mxu0
    %v574 = vadd.f32 0.0, %v573
    %575 = vmatmul.bf16.gmra.mxu0 %v270
    %v576 = vpop.f32.mrf.mxu0
    %v577 = vadd.f32 0.0, %v576
    %v578 = vpop.f32.mrf.mxu0
    %v579 = vadd.f32 0.0, %v578
    %580 = vdwg.mxu0
    %v581 = vadd.f32 %v556, %v572
    %v582 = vadd.f32 %v557, %v574
    %v583 = vadd.f32 %v558, %v577
    %v584 = vadd.f32 %v559, %v579
    %v585 = vld [vmem:[%s7] sm:$0xf]
    %v586 = vld [vmem:[%s7 + $0x4] sm:$0xf]
    %v587 = vpack.c.bf16 %v582, %v581
    %v588 = vpack.c.bf16 %v584, %v583
    %v589 = vld [vmem:[%s8] sm:$0x1]
    %v591 = vperm.slane %v589, 0
    %v595 = vunpack.c.l.b16 %v585
    %v596 = vunpack.c.l.b16 %v586
    %v597 = vpack.c.b16 %v596, %v595
    %v599 = vsel %vm181, %v597, 0
    %601 = vmatpush.bf16.msra.mxu0 0
    %602 = vmatpush.bf16.msra.mxu0 0
    %603 = vmatpush.bf16.msra.mxu0 0
    %604 = vmatpush.bf16.msra.mxu0 0
    %605 = vmatpush.bf16.msra.mxu0 0
    %606 = vmatpush.bf16.msra.mxu0 0
    %607 = vmatpush.bf16.msra.mxu0 %v588
    %608 = vmatpush.bf16.msra.mxu0 %v587
    %609 = vmatmul.bf16.gmra.mxu0 %v599
    %v610 = vpop.f32.mrf.mxu0
    %v611 = vadd.f32 %v591, %v610
    %v612 = vpop.f32.mrf.mxu0
    %v613 = vadd.f32 %v591, %v612
    %614 = vdwg.mxu0
    %615 = vst.msk [vmem:[#allocation2] sm:$0xff] %vm80, %v611
    %616 = vst.msk [vmem:[#allocation2 + $0x8] sm:$0xff] %vm80, %v613
    // Predicated region
    $region38: #{tpu_custom_call.1} parent=1 // pred_check
      _
    $region39: #{tpu_custom_call.1} parent=1 // pred_check_branch
      %618 = sbr.rel (0) target = $region41
    $region40: #{tpu_custom_call.1} parent=1 // pred_region
      %620 = vsyncadd [#allocation3], 0
      %s621 = sshll.u32 [#allocation2], 4
      %s622 = int_to_ptr.vmem [resolvable:$true] %s621
      %s623 = sshll.u32 %s9, 4
      %s624 = int_to_ptr.hbm [resolvable:$true] %s623
      %629 = dma.vmem_to_hbm [thread:$0]  %s622, 256, %s624, [#allocation3], 128, 128, 8
    $region41: #{tpu_custom_call.1} parent=1 // pred_fallthru
      _
    // Predicated region
    $region42: #{tpu_custom_call.1} parent=1 // pred_check
      _
    $region43: #{tpu_custom_call.1} parent=1 // pred_check_branch
      %631 = sbr.rel (0) target = $region45
    $region44: #{tpu_custom_call.1} parent=1 // pred_region
      %633 = dma.done [#allocation3], 256
    $region45: #{tpu_custom_call.1} parent=1 // pred_fallthru
      _
    %634 = vsyncpa [#allocation3], 1

</llo_original>
